<compile_context>
chip_gen: v6e
topology: v6e:2x2x1
jax: 0.10.0
libtpu: 0.0.40
codegen_flags: <defaults>
</compile_context>

<pallas_src>
import jax
import jax.numpy as jnp
import numpy as np
from jax.experimental import pallas as pl
from jax.experimental.pallas import tpu as pltpu


# ---------------------------------------------------------------------------
# Kernels
# ---------------------------------------------------------------------------
def lorenz96_kernel(f_ref, x_ref, o_ref):
    """Lorenz96 RHS on one (bb, N) tile; state dim N on the lane axis.

    The three circular shifts run on the XLU (free filler under the HBM-bound
    regime) and act per batch row, so padded rows from a partial last grid
    block cannot contaminate valid rows.
    """
    x = x_ref[...]
    n = x.shape[1]
    f = f_ref[0]
    # pltpu.roll requires non-negative shifts: roll(x, -1) == roll(x, n - 1).
    x_ip1 = pltpu.roll(x, shift=n - 1, axis=1)   # x[i+1]  (torch.roll(x, -1, 1))
    x_im2 = pltpu.roll(x, shift=2, axis=1)       # x[i-2]  (torch.roll(x,  2, 1))
    x_im1 = pltpu.roll(x, shift=1, axis=1)       # x[i-1]  (torch.roll(x, +1, 1))
    o_ref[...] = ((x_ip1 - x_im2) * x_im1 - x + f).astype(o_ref.dtype)


def lorenz96_kernel_transposed(f_ref, xt_ref, ot_ref):
    """Same RHS on an (N, bb_lanes) tile: batch on lanes (lane-dense stores),
    state dim N on sublanes, circular shifts along axis 0."""
    xt = xt_ref[...]
    n = xt.shape[0]
    f = f_ref[0]
    x_ip1 = pltpu.roll(xt, shift=n - 1, axis=0)
    x_im2 = pltpu.roll(xt, shift=2, axis=0)
    x_im1 = pltpu.roll(xt, shift=1, axis=0)
    ot_ref[...] = ((x_ip1 - x_im2) * x_im1 - xt + f).astype(ot_ref.dtype)


# ---------------------------------------------------------------------------
# Tiling helpers
# ---------------------------------------------------------------------------
def _vmem_capacity_bytes():
    try:
        return int(pltpu.get_tpu_info().vmem_capacity_bytes)
    except Exception:
        return 64 * 1024 * 1024  # conservative: v7x per-TC VMEM


_TARGET_BLOCK_BYTES = 4 << 20  # multi-MiB tiles reach ~85%+ of the HBM roofline


def _sublane_align(dtype):
    return {4: 8, 2: 16, 1: 32}.get(jnp.dtype(dtype).itemsize, 8)


def _choose_tile(tiled_extent, row_bytes, align):
    """Largest `align`-aligned tile along the tiled axis.

    Bytes-based target (~4 MiB per input block, no row-count cap) so the
    ~0.35 us/grid-step pipeline overhead stays negligible, while keeping the
    4 live buffers (in + out, double-buffered) well inside a capacity-derived
    VMEM budget (v7x has only 64 MiB per TC).  Returning the full extent is
    always layout-legal; otherwise the tile is an `align` multiple and the
    last grid block may be partial.
    """
    vmem_cap = _vmem_capacity_bytes()
    per_block = min(_TARGET_BLOCK_BYTES, max(1 << 20, (vmem_cap * 3 // 4) // 4))
    t = max(1, per_block // max(row_bytes, 1))
    if t >= tiled_extent:
        return tiled_extent
    return max(align, (t // align) * align)


def _vmem_limit(block_elems, itemsize):
    buffer_bytes = 4 * block_elems * itemsize        # in + out, double-buffered
    return int(min(_vmem_capacity_bytes(), buffer_bytes + (16 << 20)))


# ---------------------------------------------------------------------------
# Wrappers
# ---------------------------------------------------------------------------
def lorenz96_odefunc(t, x, f, *, batch_tile=None):
    """Pallas Lorenz96 RHS for x of shape (B, N); matches the torch module.

    N (the roll axis, torch dim=1) is kept as one full lane-axis block.  For
    lane-dense stores N should be a multiple of 128; for the canonical N=40
    prefer `lorenz96_odefunc_transposed` with an (N, B) state layout.
    """
    del t  # unused; kept for ODE-func signature parity
    B, N = x.shape
    itemsize = jnp.dtype(x.dtype).itemsize
    bb = batch_tile if batch_tile is not None else _choose_tile(
        B, N * itemsize, _sublane_align(x.dtype))
    bb = min(bb, B)
    grid = (pl.cdiv(B, bb),)
    # SMEM scalar: no recompile per forcing value, traced f is fine.
    f_arr = jnp.asarray(f, dtype=jnp.float32).reshape((1,))

    return pl.pallas_call(
        lorenz96_kernel,
        out_shape=jax.ShapeDtypeStruct((B, N), x.dtype),
        grid=grid,
        in_specs=[
            pl.BlockSpec(memory_space=pltpu.MemorySpace.SMEM),  # forcing scalar
            pl.BlockSpec((bb, N), lambda i: (i, 0)),
        ],
        out_specs=pl.BlockSpec((bb, N), lambda i: (i, 0)),
        compiler_params=pltpu.CompilerParams(
            dimension_semantics=("parallel",),
            vmem_limit_bytes=_vmem_limit(bb * N, itemsize),
        ),
    )(f_arr, x)


def lorenz96_odefunc_transposed(t, xt, f, *, lane_tile=None):
    """Lane-dense variant for small state dims (e.g. canonical N=40).

    `xt` has shape (N, B): state on sublanes, batch on the lane axis, so every
    store is an unmasked full-lane vst and VMEM layout padding is minimal.
    Rolls run along axis 0 over the full, untiled N.
    """
    del t
    N, B = xt.shape
    itemsize = jnp.dtype(xt.dtype).itemsize
    bl = lane_tile if lane_tile is not None else _choose_tile(B, N * itemsize, 128)
    bl = min(bl, B)
    grid = (pl.cdiv(B, bl),)
    f_arr = jnp.asarray(f, dtype=jnp.float32).reshape((1,))

    return pl.pallas_call(
        lorenz96_kernel_transposed,
        out_shape=jax.ShapeDtypeStruct((N, B), xt.dtype),
        grid=grid,
        in_specs=[
            pl.BlockSpec(memory_space=pltpu.MemorySpace.SMEM),
            pl.BlockSpec((N, bl), lambda i: (0, i)),
        ],
        out_specs=pl.BlockSpec((N, bl), lambda i: (0, i)),
        compiler_params=pltpu.CompilerParams(
            dimension_semantics=("parallel",),
            vmem_limit_bytes=_vmem_limit(N * bl, itemsize),
        ),
    )(f_arr, xt)


def lorenz96_ref(t, x, f):
    del t
    return (jnp.roll(x, -1, axis=1) - jnp.roll(x, 2, axis=1)) * jnp.roll(
        x, 1, axis=1) - x + f


if __name__ == "__main__":
    F_FORCING = 8.0  # deterministic "parameter" from __init__
    t0 = jnp.float32(0.0)
    key = jax.random.PRNGKey(0)
    k1, k2, k3 = jax.random.split(key, 3)

    # Primary example (matches the module's dim=1 roll axis): x of shape (B, N).
    B, N = 8, 128
    x = jax.random.normal(k1, (B, N), dtype=jnp.float32)
    out = jax.block_until_ready(lorenz96_odefunc(t0, x, F_FORCING))
    np.testing.assert_allclose(np.asarray(out),
                               np.asarray(lorenz96_ref(t0, x, F_FORCING)),
                               rtol=1e-6, atol=1e-6)

    # Multi-vreg lane rolls (N=256) + non-sublane-aligned batch with a partial
    # last grid block (B=20, batch_tile=8): validates that the roll wraps over
    # the logical N and that padded batch rows are harmless.
    x2 = jax.random.normal(k2, (20, 256), dtype=jnp.float32)
    out2 = jax.block_until_ready(lorenz96_odefunc(t0, x2, F_FORCING, batch_tile=8))
    np.testing.assert_allclose(np.asarray(out2),
                               np.asarray(lorenz96_ref(t0, x2, F_FORCING)),
                               rtol=1e-6, atol=1e-6)

    # Lane-dense-batch layout for the canonical small state dim (N=40): state
    # stored transposed as (N, B) so stores are unmasked full-lane writes.
    xt = jax.random.normal(k3, (40, 256), dtype=jnp.float32)   # (N, B)
    out_t = jax.block_until_ready(lorenz96_odefunc_transposed(t0, xt, F_FORCING))
    ref_t = lorenz96_ref(t0, xt.T, F_FORCING).T
    np.testing.assert_allclose(np.asarray(out_t), np.asarray(ref_t),
                               rtol=1e-6, atol=1e-6)

    print("KERNEL_OK")
</pallas_src>

<mosaic_0001>
module attributes {stable_mosaic.version = 11 : i64} {
  func.func @lorenz96_kernel(%arg0: i32, %arg1: memref<1xf32, #tpu.memory_space<smem>>, %arg2: memref<8x128xf32, #tpu.memory_space<vmem>>, %arg3: memref<8x128xf32, #tpu.memory_space<vmem>>) attributes {dimension_semantics = [#tpu.dimension_semantics<parallel>], iteration_bounds = array<i64: 1>, scalar_prefetch = 0 : i64, scratch_operands = 0 : i64, tpu.core_type = #tpu.core_type<tc>, window_params = [{transform_indices = @transform_0, window_bounds = array<i64: 1>}, {transform_indices = @transform_1, window_bounds = array<i64: 8, 128>}, {transform_indices = @transform_2, window_bounds = array<i64: 8, 128>}]} {
    %c0 = arith.constant 0 : index
    %c0_0 = arith.constant 0 : index
    %0 = vector.load %arg2[%c0, %c0_0] : memref<8x128xf32, #tpu.memory_space<vmem>>, vector<8x128xf32>
    %c0_1 = arith.constant 0 : index
    %1 = memref.load %arg1[%c0_1] : memref<1xf32, #tpu.memory_space<smem>>
    %c127_i32 = arith.constant 127 : i32
    %2 = tpu.dynamic_rotate %0 by %c127_i32 dim 1 : vector<8x128xf32>, i32 -> vector<8x128xf32>
    %c2_i32 = arith.constant 2 : i32
    %3 = tpu.dynamic_rotate %0 by %c2_i32 dim 1 : vector<8x128xf32>, i32 -> vector<8x128xf32>
    %c1_i32 = arith.constant 1 : i32
    %4 = tpu.dynamic_rotate %0 by %c1_i32 dim 1 : vector<8x128xf32>, i32 -> vector<8x128xf32>
    %5 = arith.subf %2, %3 : vector<8x128xf32>
    %6 = arith.mulf %5, %4 : vector<8x128xf32>
    %7 = arith.subf %6, %0 : vector<8x128xf32>
    %8 = vector.broadcast %1 : f32 to vector<8x128xf32>
    %9 = arith.addf %7, %8 : vector<8x128xf32>
    %c0_2 = arith.constant 0 : index
    %c0_3 = arith.constant 0 : index
    %10 = vector.load %arg3[%c0_2, %c0_3] : memref<8x128xf32, #tpu.memory_space<vmem>>, vector<8x128xf32>
    tpu.vector_store %arg3[%c0_2, %c0_3], %9 {strides = array<i32>} : memref<8x128xf32, #tpu.memory_space<vmem>>, vector<8x128xf32>,
    return
  }
  func.func @transform_0(%arg0: i32) -> i32 {
    %c0_i32 = arith.constant 0 : i32
    %c0_i32_0 = arith.constant 0 : i32
    return %c0_i32 : i32
  }
  func.func @transform_1(%arg0: i32) -> (i32, i32) {
    %c0_i32 = arith.constant 0 : i32
    %c0_i32_0 = arith.constant 0 : i32
    return %arg0, %c0_i32 : i32, i32
  }
  func.func @transform_2(%arg0: i32) -> (i32, i32) {
    %c0_i32 = arith.constant 0 : i32
    %c0_i32_0 = arith.constant 0 : i32
    return %arg0, %c0_i32 : i32, i32
  }
}

</mosaic_0001>

<llo_original>
// kernel: tpu_custom_call.1
$region0: #{tpu_custom_call.1}
  #allocation0 [shape = 'u32[]', space=smem, size = 0x4, offset = 0x4, fixed_abs, tag = 'smem constant byte address 0x4 - core index']
  #allocation1 [shape = 'u32[144,128]{1,0:T(1,128)}', space=vmem, size = 0x12000, scoped, tag = 'internal scratch']
  #allocation2 [shape = 'f32[1]{0:T(128)S(6)}', space=smem, size = 0x200, scoped, tag = 'scoped memory for tpu_custom_call.1']
  %s0 = inlined_call_operand.<no memory space> [shape: f32[1], index: 0, kind: input, shape index: {}]
  %s1 = inlined_call_operand.hbm [shape: f32[8,128], index: 1, kind: input, shape index: {}]
  %s2 = inlined_call_operand.hbm [shape: f32[8,128], index: 2, kind: output, shape index: {}]
  %s3 = sld [smem:[#allocation0]]
  $region22: #{tpu_custom_call.1} parent=0
    _
  %s5 = ssub.s32 1, %s3
  %s6 = scalar_select 0, %s5, %s3
  %7 = sst [smem:[#allocation2]] %s0
  $region1: #{tpu_custom_call.1} parent=0
    #allocation3 [shape = 'u8[4096]{0}', space=vmem, size = 0x1000, scoped, tag = 'input window, operand 1, single buffered']
    #allocation4 [shape = 's32[1]{0}', space=sflag, size = 0x4, scoped, tag = 'scoped memory for tpu_custom_call.1']
    #allocation5 [shape = 's32[1]{0}', space=sflag, size = 0x4, scoped, tag = 'scoped memory for tpu_custom_call.1']
    #allocation6 [shape = 'u8[4096]{0}', space=vmem, size = 0x1000, scoped, tag = 'output window, operand 0, single buffered']
    %8 = vsyncpa [#allocation4], 0
    %9 = vsyncpa [#allocation5], 0
    // Predicated region
    $region2: #{tpu_custom_call.1} parent=1 // pred_check
      _
    $region3: #{tpu_custom_call.1} parent=1 // pred_check_branch
      %11 = sbr.rel (0) target = $region5
    $region4: #{tpu_custom_call.1} parent=1 // pred_region
      _
    $region5: #{tpu_custom_call.1} parent=1 // pred_fallthru
      _
    // Predicated region
    $region6: #{tpu_custom_call.1} parent=1 // pred_check
      _
    $region7: #{tpu_custom_call.1} parent=1 // pred_check_branch
      %13 = sbr.rel (0) target = $region9
    $region8: #{tpu_custom_call.1} parent=1 // pred_region
      %s15 = ssub.s32 128, 128
      %16 = vsyncadd [#allocation4], %s15
      %s18 = sshll.u32 [#allocation3], 4
      %s19 = int_to_ptr.vmem [resolvable:$true] %s18
      %21 = dma.hbm_to_vmem [thread:$0]  %s1, 128, %s19, [#allocation4]
    $region9: #{tpu_custom_call.1} parent=1 // pred_fallthru
      _
    // Predicated region
    $region10: #{tpu_custom_call.1} parent=1 // pred_check
      _
    $region11: #{tpu_custom_call.1} parent=1 // pred_check_branch
      %23 = sbr.rel (0) target = $region13
    $region12: #{tpu_custom_call.1} parent=1 // pred_region
      %24 = dma.done [#allocation4], 128
    $region13: #{tpu_custom_call.1} parent=1 // pred_fallthru
      _
    %v25 = vld [vmem:[#allocation3] sm:$0xff]
    %s26 = sld [smem:[#allocation2]]
    %27 = vrot.lane.b32.xlu0 %v25, 127
    %v28 = vpop.permute.xlu0 %27
    %29 = vrot.lane.b32.xlu0 %v25, 2
    %v30 = vpop.permute.xlu0 %29
    %31 = vrot.lane.b32.xlu0 %v25, 1
    %v32 = vpop.permute.xlu0 %31
    %v33 = vsub.f32 %v28, %v30
    %v34 = vmul.f32 %v33, %v32
    %v35 = vsub.f32 %v34, %v25
    %v36 = vstv %s26
    %v37 = vadd.f32 %v35, %v36
    %38 = vst [vmem:[#allocation6] sm:$0xff] %v37
    // Predicated region
    $region14: #{tpu_custom_call.1} parent=1 // pred_check
      _
    $region15: #{tpu_custom_call.1} parent=1 // pred_check_branch
      %40 = sbr.rel (0) target = $region17
    $region16: #{tpu_custom_call.1} parent=1 // pred_region
      %s42 = ssub.s32 128, 128
      %43 = vsyncadd [#allocation5], %s42
      %s45 = sshll.u32 [#allocation6], 4
      %s46 = int_to_ptr.vmem [resolvable:$true] %s45
      %48 = dma.vmem_to_hbm [thread:$0]  %s46, 128, %s2, [#allocation5]
    $region17: #{tpu_custom_call.1} parent=1 // pred_fallthru
      _
    // Predicated region
    $region18: #{tpu_custom_call.1} parent=1 // pred_check
      _
    $region19: #{tpu_custom_call.1} parent=1 // pred_check_branch
      %50 = sbr.rel (0) target = $region21
    $region20: #{tpu_custom_call.1} parent=1 // pred_region
      %51 = dma.done [#allocation5], 128
    $region21: #{tpu_custom_call.1} parent=1 // pred_fallthru
      _
    %52 = vsyncpa [#allocation4], 1
    %53 = vsyncpa [#allocation5], 1

</llo_original>
